<compile_context>
chip_gen: v7x
topology: tpu7x:2x2x1
jax: 0.10.0
libtpu: 0.0.40
codegen_flags: <defaults>
</compile_context>

<pallas_src>
import jax
import jax.numpy as jnp
from jax.experimental import pallas as pl
from jax.experimental.pallas import tpu as pltpu


def _dma_copy_kernel(x_hbm_ref, o_hbm_ref, sem):
    # Single whole-array HBM->HBM DMA (identity copy). No grid, no VMEM
    # staging, no per-step overhead, no alignment/padding requirements.
    cp = pltpu.make_async_copy(x_hbm_ref, o_hbm_ref, sem)
    cp.start()
    cp.wait()
    # TODO(synk): for multi-GiB buffers this could be split into a few large
    # chunked async copies (start all, then wait all) to overlap DMA queues.


def _pallas_identity_copy(x, out_shape):
    """Copy x into a fresh buffer of `out_shape` with one HBM->HBM DMA."""
    n = x.size
    itemsize = jnp.dtype(x.dtype).itemsize
    # Metadata-only reshape so src/dst shapes match for the DMA; the Pallas
    # output then already has the final view shape (no trailing reshape/slice).
    x_r = jnp.reshape(x, out_shape)
    return pl.pallas_call(
        _dma_copy_kernel,
        out_shape=jax.ShapeDtypeStruct(out_shape, x.dtype),
        in_specs=[pl.BlockSpec(memory_space=pl.ANY)],
        out_specs=pl.BlockSpec(memory_space=pl.ANY),
        scratch_shapes=[pltpu.SemaphoreType.DMA(())],
        # Tell XLA's scheduler the true (pure-bandwidth) cost of the call.
        cost_estimate=pl.CostEstimate(
            flops=0, transcendentals=0, bytes_accessed=2 * n * itemsize),
    )(x_r)


def _resolve_shape(total, shape):
    """Resolve a torch.view-style shape (allows a single -1)."""
    shape = list(shape)
    if shape.count(-1) > 1:
        raise ValueError("only one -1 allowed in view shape")
    if -1 in shape:
        known = 1
        for s in shape:
            if s != -1:
                known *= s
        if known == 0 or total % known != 0:
            raise ValueError(f"cannot view {total} elements as {shape}")
        shape[shape.index(-1)] = total // known
    prod = 1
    for s in shape:
        prod *= s
    if prod != total:
        raise ValueError(f"view shape {shape} incompatible with {total} elements")
    return tuple(shape)


class View:
    """JAX/Pallas equivalent of csgan.deep.layer.View (torch view/reshape).

    Default: metadata-only jnp.reshape (zero HBM traffic) — exact torch.view
    semantics.  Set use_pallas_copy=True to route the data through the Pallas
    HBM->HBM DMA copy kernel (demonstration / benchmarking of the kernel path).
    """

    def __init__(self, shape, use_pallas_copy=False):
        self.shape = tuple(shape)
        self.use_pallas_copy = use_pallas_copy

    def __call__(self, x):
        total = x.size
        out_shape = _resolve_shape(total, self.shape)

        if not self.use_pallas_copy or total == 0:
            # Recommended path: a view is metadata-only; no kernel, no copy.
            return jnp.reshape(x, out_shape)

        return _pallas_identity_copy(x, out_shape)


if __name__ == "__main__":
    key = jax.random.PRNGKey(0)
    # Conv feature map being flattened for an FC head, like x.view(2, -1) in torch.
    x = jax.random.normal(key, (2, 4, 16, 16), dtype=jnp.float32)
    ref = jnp.reshape(x, (2, 1024))

    # 1) Pallas DMA-copy path (exercises the kernel).
    y = jax.block_until_ready(View((2, -1), use_pallas_copy=True)(x))
    assert y.shape == (2, 1024), y.shape
    assert y.dtype == x.dtype
    assert bool(jnp.all(y == ref))

    # 2) Default metadata-only path.
    y_meta = jax.block_until_ready(View((2, -1))(x))
    assert y_meta.shape == (2, 1024)
    assert bool(jnp.all(y_meta == ref))

    # 3) Odd, non-128-divisible size: the raw DMA has no alignment or padding
    #    requirements, so this takes the exact same single-DMA path.
    x_odd = jax.random.normal(jax.random.PRNGKey(0), (3, 5, 7), dtype=jnp.float32)
    y_odd = jax.block_until_ready(View((-1,), use_pallas_copy=True)(x_odd))
    assert y_odd.shape == (105,)
    assert bool(jnp.all(y_odd == jnp.reshape(x_odd, (105,))))

    # 4) Also check the kernel path under jit.
    y_jit = jax.block_until_ready(jax.jit(View((2, -1), use_pallas_copy=True))(x))
    assert bool(jnp.all(y_jit == ref))

    print("KERNEL_OK")
</pallas_src>

<mosaic_0001>
module attributes {stable_mosaic.version = 11 : i64} {
  func.func @_dma_copy_kernel(%arg0: memref<2x1024xf32, #tpu.memory_space<any>>, %arg1: memref<2x1024xf32, #tpu.memory_space<any>>, %arg2: memref<!tpu.dma_semaphore, #tpu.memory_space<semaphore_mem>>) attributes {dimension_semantics = [], scalar_prefetch = 0 : i64, scratch_operands = 1 : i64, tpu.core_type = #tpu.core_type<tc>} {
    tpu.enqueue_dma source(%arg0 : memref<2x1024xf32, #tpu.memory_space<any>>) target(%arg1 : memref<2x1024xf32, #tpu.memory_space<any>>) target_semaphore(%arg2 : memref<!tpu.dma_semaphore, #tpu.memory_space<semaphore_mem>>)
    tpu.wait_dma2 semaphore(%arg2 : memref<!tpu.dma_semaphore, #tpu.memory_space<semaphore_mem>>) src(%arg0 : memref<2x1024xf32, #tpu.memory_space<any>>) dst(%arg1 : memref<2x1024xf32, #tpu.memory_space<any>>)
    return
  }
}

</mosaic_0001>

<llo_original>
// kernel: tpu_custom_call.1
$region0: #{tpu_custom_call.1}
  #allocation0 [shape = 'u32[]', space=smem, size = 0x4, offset = 0x4, fixed_abs, tag = 'smem constant byte address 0x4 - core index']
  #allocation1 [shape = 'u32[144,128]{1,0:T(1,128)}', space=vmem, size = 0x12000, scoped, tag = 'internal scratch']
  #allocation2 [shape = 's32[1]{0}', space=sflag, size = 0x4, scoped, tag = 'scratch operand']
  #allocation3 [shape = 's32[]', space=sflag, size = 0x4, offset = 0, fixed_abs, tag = 'sflag constant byte address 0x0 - dummy sync flag']
  #allocation4 [shape = 'u32[0]{0}', space=smem, size = 0, offset = 0, fixed_abs, tag = 'smem constant byte address 0x0 - null']
  %s0 = inlined_call_operand.hbm [shape: f32[2,1024], index: 0, kind: input, shape index: {}]
  %s1 = inlined_call_operand.hbm [shape: f32[2,1024], index: 1, kind: output, shape index: {}]
  %s2 = sld [smem:[#allocation0]]
  $region2: #{tpu_custom_call.1} parent=0
    _
  %s4 = ssub.s32 1, %s2
  %s5 = scalar_select 0, %s4, %s2
  %s7 = sshll.u32 1, 14
  %s8 = sxor.u32 4294967295, %s7
  %s11 = sshll.u32 3, 24
  %s12 = sxor.u32 4294967295, %s11
  %s13 = sand.u32 0, %s12
  %s15 = sor.u32 %s13, 0
  %18 = dma.general %s0, 256, %s1, [#allocation2], [#allocation3], [#allocation4], %s15, 0
  %s19 = smul.u32 2, 1
  %s20 = smul.u32 %s19, 8
  %s21 = sshll.u32 %s20, 4
  %22 = dma.done [#allocation2], %s21
  %23 = vsyncmov [#allocation2]
  %s24 = vpop.sfrf %23
  %p25 = scmp.eq.s32.totalorder %s24, 0
  %p26 = pneg %p25
  %28 = shalt.err (%p26)

</llo_original>
